<compile_context>
chip_gen: v7x
topology: tpu7x:2x2x1
jax: 0.10.0
libtpu: 0.0.40
codegen_flags: <defaults>
</compile_context>

<pallas_src>
import functools

import jax
import jax.numpy as jnp
from jax.experimental import pallas as pl
from jax.experimental.pallas import tpu as pltpu

_LANES = 128
_SMOOTH = 1e-6


def _dice_partial_kernel(x_ref, t_ref, inter_ref, sum_ref, *, tr, r_true, ragged):
    """Accumulate lane-wise partial sums of x*t and x+t into resident (N,128) buffers."""
    ki = pl.program_id(0)

    @pl.when(ki == 0)
    def _init():
        inter_ref[...] = jnp.zeros_like(inter_ref)
        sum_ref[...] = jnp.zeros_like(sum_ref)

    x = x_ref[...].astype(jnp.float32)
    t = t_ref[...].astype(jnp.float32)

    def _accum(xv, tv):
        # Lane-wise partial sums only (pure VPU adds); the cross-lane (XLU)
        # reduction is deferred to the tiny JAX epilogue.
        inter_ref[...] += jnp.sum(xv * tv, axis=1)   # (N, 128)
        sum_ref[...] += jnp.sum(xv + tv, axis=1)     # (N, 128) == sum(x) + sum(t)

    if ragged:
        last = pl.num_programs(0) - 1

        @pl.when(ki != last)
        def _body():
            _accum(x, t)

        @pl.when(ki == last)
        def _tail():
            # Only the last (partial) tile pays the iota/compare/select cost.
            rows = ki * tr + jax.lax.broadcasted_iota(jnp.int32, x.shape, 1)
            valid = rows < r_true
            _accum(jnp.where(valid, x, 0.0), jnp.where(valid, t, 0.0))
    else:
        _accum(x, t)


@jax.jit
def dice_loss(inp, target):
    n = inp.shape[0]
    x = inp.reshape(n, -1)
    t = target.reshape(n, -1)
    d = x.shape[1]

    if d % _LANES != 0:
        # Slow path: materializes padded HBM copies of both inputs.  Typical
        # NCHW shapes (C*H*W % 128 == 0) never hit this.
        # TODO(synk): mask the lane tail in-kernel instead of jnp.pad to avoid
        # the extra HBM round trip for non-multiple-of-128 feature sizes.
        pad = _LANES - d % _LANES
        x = jnp.pad(x, ((0, 0), (0, pad)))
        t = jnp.pad(t, ((0, 0), (0, pad)))
        d += pad

    r = d // _LANES
    x = x.reshape(n, r, _LANES)   # row-major reshape, no copy
    t = t.reshape(n, r, _LANES)

    # Row-tile height: multiple of the dtype's sublane packing (8 for 4-byte,
    # 16 for 2-byte, 32 for 1-byte dtypes), sized so one (x, t) block pair is
    # ~8 MiB -> ~16 MiB double-buffered, safely under the 32 MiB scoped VMEM
    # limit on v5e / v6e / v7x.
    sub = max(8,
              8 * (4 // max(x.dtype.itemsize, 1)),
              8 * (4 // max(t.dtype.itemsize, 1)))
    pair_budget = 8 * 1024 * 1024
    bytes_per_row = n * _LANES * (x.dtype.itemsize + t.dtype.itemsize)
    tr_cap = max(sub, (pair_budget // bytes_per_row) // sub * sub)

    if r <= tr_cap:
        tr = r            # single tile over the full row axis (always legal)
    else:
        tr = tr_cap       # multiple of `sub` (>= 8)

    kc = pl.cdiv(r, tr)
    ragged = (kc * tr != r)   # only the last tile needs a row mask

    kernel = functools.partial(
        _dice_partial_kernel, tr=tr, r_true=r, ragged=ragged)

    p_inter, p_sum = pl.pallas_call(
        kernel,
        out_shape=(
            jax.ShapeDtypeStruct((n, _LANES), jnp.float32),
            jax.ShapeDtypeStruct((n, _LANES), jnp.float32),
        ),
        grid_spec=pltpu.PrefetchScalarGridSpec(
            num_scalar_prefetch=0,
            grid=(kc,),
            in_specs=[
                pl.BlockSpec((n, tr, _LANES), lambda k: (0, k, 0)),
                pl.BlockSpec((n, tr, _LANES), lambda k: (0, k, 0)),
            ],
            out_specs=[
                pl.BlockSpec((n, _LANES), lambda k: (0, 0)),
                pl.BlockSpec((n, _LANES), lambda k: (0, 0)),
            ],
        ),
        compiler_params=pltpu.CompilerParams(
            dimension_semantics=("arbitrary",),
            vmem_limit_bytes=32 * 1024 * 1024,
        ),
    )(x, t)

    # Tiny epilogue: cross-lane reduce, dice, mean.
    inter = p_inter.sum(axis=1)          # (n,)  = sum(x * t) per sample
    denom = p_sum.sum(axis=1)            # (n,)  = sum(x) + sum(t) per sample
    smooth = jnp.float32(_SMOOTH)
    dice = 2.0 * (inter + smooth) / (denom + smooth)
    return 1.0 - dice.sum() / jnp.float32(n)


def dice_loss_ref(inp, target):
    n = inp.shape[0]
    smooth = 1e-6
    x = inp.reshape(n, -1).astype(jnp.float32)
    t = target.reshape(n, -1).astype(jnp.float32)
    inter = (x * t).sum(1)
    dice = 2.0 * (inter + smooth) / (x.sum(1) + t.sum(1) + smooth)
    return 1.0 - dice.sum() / n


if __name__ == "__main__":
    key = jax.random.PRNGKey(0)
    k1, k2 = jax.random.split(key)

    # NCHW inputs: batch=2, channels=4, spatial=16x16
    shape = (2, 4, 16, 16)
    inp = jax.nn.sigmoid(jax.random.normal(k1, shape, dtype=jnp.float32))
    tgt = (jax.random.uniform(k2, shape) > 0.5).astype(jnp.float32)

    loss = dice_loss(inp, tgt)
    jax.block_until_ready(loss)

    ref = dice_loss_ref(inp, tgt)
    assert jnp.allclose(loss, ref, atol=1e-5, rtol=1e-5), (loss, ref)

    print("KERNEL_OK")
</pallas_src>

<mosaic_0001>
module attributes {stable_mosaic.version = 11 : i64} {
  func.func @_dice_partial_kernel(%arg0: i32, %arg1: memref<2x8x128xf32, #tpu.memory_space<vmem>>, %arg2: memref<2x8x128xf32, #tpu.memory_space<vmem>>, %arg3: memref<2x128xf32, #tpu.memory_space<vmem>>, %arg4: memref<2x128xf32, #tpu.memory_space<vmem>>) attributes {dimension_semantics = [#tpu.dimension_semantics<arbitrary>], iteration_bounds = array<i64: 1>, scalar_prefetch = 0 : i64, scratch_operands = 0 : i64, tpu.core_type = #tpu.core_type<tc>, window_params = [{transform_indices = @transform_0, window_bounds = array<i64: 2, 8, 128>}, {transform_indices = @transform_1, window_bounds = array<i64: 2, 8, 128>}, {pipeline_mode = #tpu.pipeline_mode<synchronous>, transform_indices = @transform_2, window_bounds = array<i64: 2, 128>}, {pipeline_mode = #tpu.pipeline_mode<synchronous>, transform_indices = @transform_3, window_bounds = array<i64: 2, 128>}]} {
    %c0_i32 = arith.constant 0 : i32
    %0 = arith.cmpi eq, %arg0, %c0_i32 : i32
    %1 = arith.extui %0 : i1 to i32
    %c0_i32_0 = arith.constant 0 : i32
    %2 = arith.cmpi ne, %1, %c0_i32_0 : i32
    scf.if %2 {
      %cst_15 = arith.constant 0.000000e+00 : f32
      %15 = vector.broadcast %cst_15 : f32 to vector<2x128xf32>
      %c0_16 = arith.constant 0 : index
      %c0_17 = arith.constant 0 : index
      %16 = vector.load %arg3[%c0_16, %c0_17] : memref<2x128xf32, #tpu.memory_space<vmem>>, vector<2x128xf32>
      tpu.vector_store %arg3[%c0_16, %c0_17], %15 {strides = array<i32>} : memref<2x128xf32, #tpu.memory_space<vmem>>, vector<2x128xf32>,
      %cst_18 = arith.constant 0.000000e+00 : f32
      %17 = vector.broadcast %cst_18 : f32 to vector<2x128xf32>
      %c0_19 = arith.constant 0 : index
      %c0_20 = arith.constant 0 : index
      %18 = vector.load %arg4[%c0_19, %c0_20] : memref<2x128xf32, #tpu.memory_space<vmem>>, vector<2x128xf32>
      tpu.vector_store %arg4[%c0_19, %c0_20], %17 {strides = array<i32>} : memref<2x128xf32, #tpu.memory_space<vmem>>, vector<2x128xf32>,
    } else {
    }
    %c0 = arith.constant 0 : index
    %c0_1 = arith.constant 0 : index
    %c0_2 = arith.constant 0 : index
    %3 = vector.load %arg1[%c0, %c0_1, %c0_2] : memref<2x8x128xf32, #tpu.memory_space<vmem>>, vector<2x8x128xf32>
    %c0_3 = arith.constant 0 : index
    %c0_4 = arith.constant 0 : index
    %c0_5 = arith.constant 0 : index
    %4 = vector.load %arg2[%c0_3, %c0_4, %c0_5] : memref<2x8x128xf32, #tpu.memory_space<vmem>>, vector<2x8x128xf32>
    %c0_6 = arith.constant 0 : index
    %c0_7 = arith.constant 0 : index
    %5 = vector.load %arg3[%c0_6, %c0_7] : memref<2x128xf32, #tpu.memory_space<vmem>>, vector<2x128xf32>
    %6 = arith.mulf %3, %4 : vector<2x8x128xf32>
    %cst = arith.constant dense<0.000000e+00> : vector<2x128xf32>
    %7 = vector.multi_reduction <add>, %6, %cst [1] : vector<2x8x128xf32> to vector<2x128xf32>
    %8 = arith.addf %5, %7 : vector<2x128xf32>
    %c0_8 = arith.constant 0 : index
    %c0_9 = arith.constant 0 : index
    %9 = vector.load %arg3[%c0_8, %c0_9] : memref<2x128xf32, #tpu.memory_space<vmem>>, vector<2x128xf32>
    tpu.vector_store %arg3[%c0_8, %c0_9], %8 {strides = array<i32>} : memref<2x128xf32, #tpu.memory_space<vmem>>, vector<2x128xf32>,
    %c0_10 = arith.constant 0 : index
    %c0_11 = arith.constant 0 : index
    %10 = vector.load %arg4[%c0_10, %c0_11] : memref<2x128xf32, #tpu.memory_space<vmem>>, vector<2x128xf32>
    %11 = arith.addf %3, %4 : vector<2x8x128xf32>
    %cst_12 = arith.constant dense<0.000000e+00> : vector<2x128xf32>
    %12 = vector.multi_reduction <add>, %11, %cst_12 [1] : vector<2x8x128xf32> to vector<2x128xf32>
    %13 = arith.addf %10, %12 : vector<2x128xf32>
    %c0_13 = arith.constant 0 : index
    %c0_14 = arith.constant 0 : index
    %14 = vector.load %arg4[%c0_13, %c0_14] : memref<2x128xf32, #tpu.memory_space<vmem>>, vector<2x128xf32>
    tpu.vector_store %arg4[%c0_13, %c0_14], %13 {strides = array<i32>} : memref<2x128xf32, #tpu.memory_space<vmem>>, vector<2x128xf32>,
    return
  }
  func.func @transform_0(%arg0: i32) -> (i32, i32, i32) {
    %c0_i32 = arith.constant 0 : i32
    %c0_i32_0 = arith.constant 0 : i32
    %c0_i32_1 = arith.constant 0 : i32
    return %c0_i32, %arg0, %c0_i32_0 : i32, i32, i32
  }
  func.func @transform_1(%arg0: i32) -> (i32, i32, i32) {
    %c0_i32 = arith.constant 0 : i32
    %c0_i32_0 = arith.constant 0 : i32
    %c0_i32_1 = arith.constant 0 : i32
    return %c0_i32, %arg0, %c0_i32_0 : i32, i32, i32
  }
  func.func @transform_2(%arg0: i32) -> (i32, i32) {
    %c0_i32 = arith.constant 0 : i32
    %c0_i32_0 = arith.constant 0 : i32
    %c0_i32_1 = arith.constant 0 : i32
    return %c0_i32, %c0_i32_0 : i32, i32
  }
  func.func @transform_3(%arg0: i32) -> (i32, i32) {
    %c0_i32 = arith.constant 0 : i32
    %c0_i32_0 = arith.constant 0 : i32
    %c0_i32_1 = arith.constant 0 : i32
    return %c0_i32, %c0_i32_0 : i32, i32
  }
}

</mosaic_0001>

<llo_original>
// kernel: dice_loss.1
$region0: #{dice_loss.1}
  #allocation0 [shape = 'u32[]', space=smem, size = 0x4, offset = 0x4, fixed_abs, tag = 'smem constant byte address 0x4 - core index']
  #allocation1 [shape = 'u32[144,128]{1,0:T(1,128)}', space=vmem, size = 0x12000, scoped, tag = 'internal scratch']
  %s0 = inlined_call_operand.vmem [shape: f32[2,8,128], index: 0, kind: input, shape index: {}]
  %s1 = inlined_call_operand.vmem [shape: f32[2,8,128], index: 1, kind: input, shape index: {}]
  %s2 = inlined_call_operand.vmem [shape: f32[2,128], index: 2, kind: output, shape index: {0}]
  %s3 = inlined_call_operand.vmem [shape: f32[2,128], index: 3, kind: output, shape index: {1}]
  %4 = xla_tuple %s2, %s3
  %s5 = sld [smem:[#allocation0]]
  $region30: #{dice_loss.1} parent=0
    _
  %s7 = ssub.s32 1, %s5
  %s8 = scalar_select 0, %s7, %s5
  // Predicated region
  $region2: #{dice_loss.1} parent=0 // pred_check
    _
  $region3: #{dice_loss.1} parent=0 // pred_check_branch
    %10 = sbr.rel (0) target = $region5
  $region4: #{dice_loss.1} parent=0 // pred_region
    _
  $region5: #{dice_loss.1} parent=0 // pred_fallthru
    _
  // Predicated region
  $region6: #{dice_loss.1} parent=0 // pred_check
    _
  $region7: #{dice_loss.1} parent=0 // pred_check_branch
    %12 = sbr.rel (0) target = $region9
  $region8: #{dice_loss.1} parent=0 // pred_region
    _
  $region9: #{dice_loss.1} parent=0 // pred_fallthru
    _
  %p13 = scmp.eq.s32.totalorder 0, 0
  // Predicated region
  $region10: #{dice_loss.1} parent=0 // pred_check
    %p14 = pneg %p13
  $region11: #{dice_loss.1} parent=0 // pred_check_branch
    %16 = sbr.rel (%p14) target = $region13
  $region12: #{dice_loss.1} parent=0 // pred_region
    %17 = vst [vmem:[%s2] sm:$0x3] 0.0
    %18 = vst [vmem:[%s3] sm:$0x3] 0.0
  $region13: #{dice_loss.1} parent=0 // pred_fallthru
    _
  %v19 = vld [vmem:[%s0] sm:$0xff]
  %v20 = vld [vmem:[%s0 + $0x8] sm:$0xff]
  %v21 = vld [vmem:[%s1] sm:$0xff]
  %v22 = vld [vmem:[%s1 + $0x8] sm:$0xff]
  %v23 = vld [vmem:[%s2] sm:$0x3]
  %v24 = vmul.f32 %v19, %v21
  %v25 = vmul.f32 %v20, %v22
  %v26 = vrot.slane %v24, 4
  %v27 = vadd.f32 %v24, %v26
  %v28 = vrot.slane %v27, 2
  %v29 = vadd.f32 %v27, %v28
  %v30 = vrot.slane %v29, 1
  %v31 = vadd.f32 %v29, %v30
  %v32 = vrot.slane %v25, 4
  %v33 = vadd.f32 %v25, %v32
  %v34 = vrot.slane %v33, 2
  %v35 = vadd.f32 %v33, %v34
  %v36 = vrot.slane %v35, 1
  %v37 = vadd.f32 %v35, %v36
  %vm40 = vcmask 1041409
  %v41 = vsel %vm40, %v37, %v31
  %v43 = vadd.f32 %v23, %v41
  %44 = vst [vmem:[%s2] sm:$0x3] %v43
  %v45 = vld [vmem:[%s3] sm:$0x3]
  %v46 = vadd.f32 %v19, %v21
  %v47 = vadd.f32 %v20, %v22
  %v48 = vrot.slane %v46, 4
  %v49 = vadd.f32 %v46, %v48
  %v50 = vrot.slane %v49, 2
  %v51 = vadd.f32 %v49, %v50
  %v52 = vrot.slane %v51, 1
  %v53 = vadd.f32 %v51, %v52
  %v54 = vrot.slane %v47, 4
  %v55 = vadd.f32 %v47, %v54
  %v56 = vrot.slane %v55, 2
  %v57 = vadd.f32 %v55, %v56
  %v58 = vrot.slane %v57, 1
  %v59 = vadd.f32 %v57, %v58
  %v62 = vsel %vm40, %v59, %v53
  %v64 = vadd.f32 %v45, %v62
  %65 = vst [vmem:[%s3] sm:$0x3] %v64
  // Predicated region
  $region14: #{dice_loss.1} parent=0 // pred_check
    _
  $region15: #{dice_loss.1} parent=0 // pred_check_branch
    %67 = sbr.rel (0) target = $region17
  $region16: #{dice_loss.1} parent=0 // pred_region
    _
  $region17: #{dice_loss.1} parent=0 // pred_fallthru
    _
  // Predicated region
  $region18: #{dice_loss.1} parent=0 // pred_check
    _
  $region19: #{dice_loss.1} parent=0 // pred_check_branch
    %69 = sbr.rel (0) target = $region21
  $region20: #{dice_loss.1} parent=0 // pred_region
    _
  $region21: #{dice_loss.1} parent=0 // pred_fallthru
    _
  // Predicated region
  $region22: #{dice_loss.1} parent=0 // pred_check
    _
  $region23: #{dice_loss.1} parent=0 // pred_check_branch
    %71 = sbr.rel (0) target = $region25
  $region24: #{dice_loss.1} parent=0 // pred_region
    _
  $region25: #{dice_loss.1} parent=0 // pred_fallthru
    _
  // Predicated region
  $region26: #{dice_loss.1} parent=0 // pred_check
    _
  $region27: #{dice_loss.1} parent=0 // pred_check_branch
    %73 = sbr.rel (0) target = $region29
  $region28: #{dice_loss.1} parent=0 // pred_region
    _
  $region29: #{dice_loss.1} parent=0 // pred_fallthru
    _

</llo_original>
